<compile_context>
chip_gen: v5e
topology: v5e:2x2
jax: 0.10.0
libtpu: 0.0.40
codegen_flags: <defaults>
</compile_context>

<pallas_src>
import functools

import jax
import jax.numpy as jnp
from jax import lax
from jax.experimental import pallas as pl
from jax.experimental.pallas import tpu as pltpu


def _round_up(x, m):
    return (x + m - 1) // m * m


def _actor_kernel(bounds_ref,                     # SMEM (2,)  [action_min, action_max]
                  x_ref, z_ref,                   # VMEM (TILE_N, F), (A, TILE_N)
                  w1_ref, b1_ref,                 # (32, F),  (32, 1)
                  w2_ref, b2_ref,                 # (32, 32), (32, 1)
                  wh_ref, bh_ref,                 # (2A, 32), (2A, 1)  fused mu|sigma head
                  out_ref):                       # (4A, TILE_N)  [action|logp|mu|sigma]
    A = z_ref.shape[0]

    # policy_1 -> relu.  x is natural (TILE_N, F); contract F with F so the
    # transpose is absorbed into the matmul and the result is (32, TILE_N)
    # with N lane-dense.
    h1 = lax.dot_general(w1_ref[...], x_ref[...],
                         (((1,), (1,)), ((), ())),
                         preferred_element_type=jnp.float32) + b1_ref[...]
    h1 = jnp.maximum(h1, 0.0)

    # policy_2 -> relu
    h2 = jnp.dot(w2_ref[...], h1, preferred_element_type=jnp.float32) + b2_ref[...]
    h2 = jnp.maximum(h2, 0.0)

    # fused mu / log-sigma head: one (2A, 32) x (32, TILE_N) matmul
    head = jnp.dot(wh_ref[...], h2, preferred_element_type=jnp.float32) + bh_ref[...]
    mu = head[:A, :]
    log_sigma = head[A:, :]
    sigma = jnp.exp(log_sigma)

    # Normal(mu, sigma).sample() via reparameterization with external noise z
    z = z_ref[...]                                # (A, TILE_N), already lane-dense
    action = mu + sigma * z

    # log_prob of the (pre-clamp) sampled action
    logp = -0.5 * z * z - log_sigma - 0.5 * jnp.log(2.0 * jnp.pi)

    # torch.clamp(action, min, max) with runtime SMEM bounds
    action = jnp.clip(action, bounds_ref[0], bounds_ref[1])

    # Single lane-dense output slab; direct slice stores (no concatenate temp).
    out_ref[0 * A:1 * A, :] = action
    out_ref[1 * A:2 * A, :] = logp
    out_ref[2 * A:3 * A, :] = mu
    out_ref[3 * A:4 * A, :] = sigma


@functools.partial(jax.jit, static_argnames=("tile_n",))
def nongraph_actor_forward(x, params, noise_t, action_min, action_max,
                           tile_n=8192):
    """x: (N, F) node features (natural layout); noise_t: (A, N) std-normal draws.

    Returns (action, log_probs, mu, sigma), each (N, A) float32.
    """
    N, F_ = x.shape
    A = noise_t.shape[0]

    # Tile choice: as large as allowed (amortize per-step overhead), but keep
    # >= 2 grid steps when N allows (v7x megacore) and a multiple of 128 lanes.
    tile = min(int(tile_n), max(128, _round_up(pl.cdiv(N, 2), 128)))
    tile = _round_up(tile, 128)
    n_tiles = pl.cdiv(N, tile)                    # ragged last block is OK

    # Fuse the two heads: (2A, 32) weight, (2A, 1) bias (tiny, VMEM-resident).
    wh = jnp.concatenate([params["wmu"], params["wsig"]], axis=0)
    bh = jnp.concatenate([params["bmu"], params["bsig"]], axis=0)

    bounds = jnp.stack([jnp.asarray(action_min, jnp.float32),
                        jnp.asarray(action_max, jnp.float32)])

    resident = lambda shape: pl.BlockSpec(shape, lambda i: (0, 0))

    out = pl.pallas_call(
        _actor_kernel,
        out_shape=jax.ShapeDtypeStruct((4 * A, N), jnp.float32),
        grid=(n_tiles,),
        in_specs=[
            pl.BlockSpec(memory_space=pltpu.MemorySpace.SMEM),      # bounds (2,)
            pl.BlockSpec((tile, F_), lambda i: (i, 0)),             # x (N, F) natural
            pl.BlockSpec((A, tile), lambda i: (0, i)),              # noise (A, N)
            resident((32, F_)), resident((32, 1)),                  # policy_1
            resident((32, 32)), resident((32, 1)),                  # policy_2
            resident((2 * A, 32)), resident((2 * A, 1)),            # fused mu|sigma head
        ],
        out_specs=pl.BlockSpec((4 * A, tile), lambda i: (0, i)),
        compiler_params=pltpu.CompilerParams(
            dimension_semantics=("parallel",)),                     # megacore on v7x
    )(bounds, x, noise_t,
      params["w1"], params["b1"], params["w2"], params["b2"], wh, bh)

    # One whole-slab transpose, then cheap small slices.
    slab_t = out.T                                 # (N, 4A)
    action = slab_t[:, 0 * A:1 * A]
    log_probs = slab_t[:, 1 * A:2 * A]
    mu = slab_t[:, 2 * A:3 * A]
    sigma = slab_t[:, 3 * A:4 * A]
    return action, log_probs, mu, sigma


def init_params(key, F, A, hidden=32):
    """PyTorch nn.Linear-style init, weights in (out_features, in_features) layout."""
    ks = jax.random.split(key, 8)

    def lin(kw, kb, fan_in, fan_out):
        bound = 1.0 / jnp.sqrt(float(fan_in))
        w = jax.random.uniform(kw, (fan_out, fan_in), jnp.float32, -bound, bound)
        b = jax.random.uniform(kb, (fan_out, 1), jnp.float32, -bound, bound)
        return w, b

    w1, b1 = lin(ks[0], ks[1], F, hidden)
    w2, b2 = lin(ks[2], ks[3], hidden, hidden)
    wmu, bmu = lin(ks[4], ks[5], hidden, A)
    wsig, bsig = lin(ks[6], ks[7], hidden, A)
    return {"w1": w1, "b1": b1, "w2": w2, "b2": b2,
            "wmu": wmu, "bmu": bmu, "wsig": wsig, "bsig": bsig}


def _reference(x_in, params, noise_t, action_min, action_max):
    """Pure-JAX reference of the same math (PyTorch layout: y = x @ W.T + b)."""
    h1 = jax.nn.relu(x_in @ params["w1"].T + params["b1"][:, 0])
    h2 = jax.nn.relu(h1 @ params["w2"].T + params["b2"][:, 0])
    mu = h2 @ params["wmu"].T + params["bmu"][:, 0]
    log_sig = h2 @ params["wsig"].T + params["bsig"][:, 0]
    sig = jnp.exp(log_sig)
    z = noise_t.T
    act = jnp.clip(mu + sig * z, action_min, action_max)
    logp = -0.5 * z * z - log_sig - 0.5 * jnp.log(2.0 * jnp.pi)
    return act, logp, mu, sig


if __name__ == "__main__":
    # N vehicles, F features per vehicle, A continuous actions.
    action_min, action_max = -1.0, 1.0
    key = jax.random.PRNGKey(0)

    def run_check(N, F_, A):
        k_params, k_x, k_noise = jax.random.split(jax.random.fold_in(key, N), 3)
        params = init_params(k_params, F_, A)
        x_in = jax.random.normal(k_x, (N, F_), jnp.float32)       # X_in
        # RL_indice / adjacency are unused by this module's forward compute path.
        noise_t = jax.random.normal(k_noise, (A, N), jnp.float32)  # Normal.sample noise

        action, log_probs, mu, sigma = jax.block_until_ready(
            nongraph_actor_forward(x_in, params, noise_t, action_min, action_max))

        act_r, logp_r, mu_r, sig_r = _reference(x_in, params, noise_t,
                                                action_min, action_max)
        assert jnp.allclose(mu, mu_r, atol=1e-4, rtol=1e-4)
        assert jnp.allclose(sigma, sig_r, atol=1e-4, rtol=1e-4)
        assert jnp.allclose(action, act_r, atol=1e-4, rtol=1e-4)
        assert jnp.allclose(log_probs, logp_r, atol=1e-4, rtol=1e-4)

    # Small shape consistent with the module (N=8 vehicles, F=8 features, A=4).
    run_check(N=8, F_=8, A=4)
    # Larger, ragged N to exercise the cdiv grid / multi-step (megacore) path.
    run_check(N=300, F_=8, A=4)

    print("KERNEL_OK")
</pallas_src>

<mosaic_0001>
module attributes {stable_mosaic.version = 11 : i64} {
  func.func @_actor_kernel(%arg0: i32, %arg1: memref<2xf32, #tpu.memory_space<smem>>, %arg2: memref<128x8xf32, #tpu.memory_space<vmem>>, %arg3: memref<4x128xf32, #tpu.memory_space<vmem>>, %arg4: memref<32x8xf32, #tpu.memory_space<vmem>>, %arg5: memref<32x1xf32, #tpu.memory_space<vmem>>, %arg6: memref<32x32xf32, #tpu.memory_space<vmem>>, %arg7: memref<32x1xf32, #tpu.memory_space<vmem>>, %arg8: memref<8x32xf32, #tpu.memory_space<vmem>>, %arg9: memref<8x1xf32, #tpu.memory_space<vmem>>, %arg10: memref<16x128xf32, #tpu.memory_space<vmem>>) attributes {dimension_semantics = [#tpu.dimension_semantics<parallel>], iteration_bounds = array<i64: 1>, scalar_prefetch = 0 : i64, scratch_operands = 0 : i64, tpu.core_type = #tpu.core_type<tc>, window_params = [{transform_indices = @transform_0, window_bounds = array<i64: 2>}, {transform_indices = @transform_1, window_bounds = array<i64: 128, 8>}, {transform_indices = @transform_2, window_bounds = array<i64: 4, 128>}, {pipeline_mode = #tpu.pipeline_mode<synchronous>, transform_indices = @transform_3, window_bounds = array<i64: 32, 8>}, {pipeline_mode = #tpu.pipeline_mode<synchronous>, transform_indices = @transform_4, window_bounds = array<i64: 32, 1>}, {pipeline_mode = #tpu.pipeline_mode<synchronous>, transform_indices = @transform_5, window_bounds = array<i64: 32, 32>}, {pipeline_mode = #tpu.pipeline_mode<synchronous>, transform_indices = @transform_6, window_bounds = array<i64: 32, 1>}, {pipeline_mode = #tpu.pipeline_mode<synchronous>, transform_indices = @transform_7, window_bounds = array<i64: 8, 32>}, {pipeline_mode = #tpu.pipeline_mode<synchronous>, transform_indices = @transform_8, window_bounds = array<i64: 8, 1>}, {transform_indices = @transform_9, window_bounds = array<i64: 16, 128>}]} {
    %c0 = arith.constant 0 : index
    %c0_0 = arith.constant 0 : index
    %0 = vector.load %arg4[%c0, %c0_0] : memref<32x8xf32, #tpu.memory_space<vmem>>, vector<32x8xf32>
    %c0_1 = arith.constant 0 : index
    %c0_2 = arith.constant 0 : index
    %1 = vector.load %arg2[%c0_1, %c0_2] : memref<128x8xf32, #tpu.memory_space<vmem>>, vector<128x8xf32>
    %cst = arith.constant dense<0.000000e+00> : vector<32x128xf32>
    %2 = tpu.matmul %0, %1, %cst {dimension_numbers = #tpu.dot_dimension_numbers<[1], [1], [0], [0], [0, 0, 1, 0], [], []>} : vector<32x8xf32>, vector<128x8xf32>, vector<32x128xf32> -> vector<32x128xf32>
    %c0_3 = arith.constant 0 : index
    %c0_4 = arith.constant 0 : index
    %3 = vector.load %arg5[%c0_3, %c0_4] : memref<32x1xf32, #tpu.memory_space<vmem>>, vector<32x1xf32>
    %4 = vector.broadcast %3 : vector<32x1xf32> to vector<32x128xf32>
    %5 = arith.addf %2, %4 : vector<32x128xf32>
    %cst_5 = arith.constant 0.000000e+00 : f32
    %6 = vector.broadcast %cst_5 : f32 to vector<32x128xf32>
    %7 = arith.maximumf %5, %6 : vector<32x128xf32>
    %c0_6 = arith.constant 0 : index
    %c0_7 = arith.constant 0 : index
    %8 = vector.load %arg6[%c0_6, %c0_7] : memref<32x32xf32, #tpu.memory_space<vmem>>, vector<32x32xf32>
    %cst_8 = arith.constant dense<0.000000e+00> : vector<32x128xf32>
    %9 = tpu.matmul %8, %7, %cst_8 {dimension_numbers = #tpu.dot_dimension_numbers<[1], [0], [0], [1], [0, 0, 1, 1], [], []>} : vector<32x32xf32>, vector<32x128xf32>, vector<32x128xf32> -> vector<32x128xf32>
    %c0_9 = arith.constant 0 : index
    %c0_10 = arith.constant 0 : index
    %10 = vector.load %arg7[%c0_9, %c0_10] : memref<32x1xf32, #tpu.memory_space<vmem>>, vector<32x1xf32>
    %11 = vector.broadcast %10 : vector<32x1xf32> to vector<32x128xf32>
    %12 = arith.addf %9, %11 : vector<32x128xf32>
    %cst_11 = arith.constant 0.000000e+00 : f32
    %13 = vector.broadcast %cst_11 : f32 to vector<32x128xf32>
    %14 = arith.maximumf %12, %13 : vector<32x128xf32>
    %c0_12 = arith.constant 0 : index
    %c0_13 = arith.constant 0 : index
    %15 = vector.load %arg8[%c0_12, %c0_13] : memref<8x32xf32, #tpu.memory_space<vmem>>, vector<8x32xf32>
    %cst_14 = arith.constant dense<0.000000e+00> : vector<8x128xf32>
    %16 = tpu.matmul %15, %14, %cst_14 {dimension_numbers = #tpu.dot_dimension_numbers<[1], [0], [0], [1], [0, 0, 1, 1], [], []>} : vector<8x32xf32>, vector<32x128xf32>, vector<8x128xf32> -> vector<8x128xf32>
    %c0_15 = arith.constant 0 : index
    %c0_16 = arith.constant 0 : index
    %17 = vector.load %arg9[%c0_15, %c0_16] : memref<8x1xf32, #tpu.memory_space<vmem>>, vector<8x1xf32>
    %18 = vector.broadcast %17 : vector<8x1xf32> to vector<8x128xf32>
    %19 = arith.addf %16, %18 : vector<8x128xf32>
    %20 = vector.extract_strided_slice %19 {offsets = [0, 0], sizes = [4, 128], strides = [1, 1]} : vector<8x128xf32> to vector<4x128xf32>
    %21 = vector.extract_strided_slice %19 {offsets = [4, 0], sizes = [4, 128], strides = [1, 1]} : vector<8x128xf32> to vector<4x128xf32>
    %22 = math.exp %21 : vector<4x128xf32>
    %c0_17 = arith.constant 0 : index
    %c0_18 = arith.constant 0 : index
    %23 = vector.load %arg3[%c0_17, %c0_18] : memref<4x128xf32, #tpu.memory_space<vmem>>, vector<4x128xf32>
    %24 = arith.mulf %22, %23 : vector<4x128xf32>
    %25 = arith.addf %20, %24 : vector<4x128xf32>
    %cst_19 = arith.constant -5.000000e-01 : f32
    %26 = vector.broadcast %cst_19 : f32 to vector<4x128xf32>
    %27 = arith.mulf %26, %23 : vector<4x128xf32>
    %28 = arith.mulf %27, %23 : vector<4x128xf32>
    %29 = arith.subf %28, %21 : vector<4x128xf32>
    %cst_20 = arith.constant 6.28318548 : f32
    %30 = math.log %cst_20 : f32
    %cst_21 = arith.constant 5.000000e-01 : f32
    %31 = arith.mulf %cst_21, %30 : f32
    %32 = vector.broadcast %31 : f32 to vector<4x128xf32>
    %33 = arith.subf %29, %32 : vector<4x128xf32>
    %c0_22 = arith.constant 0 : index
    %34 = memref.load %arg1[%c0_22] : memref<2xf32, #tpu.memory_space<smem>>
    %c1 = arith.constant 1 : index
    %35 = memref.load %arg1[%c1] : memref<2xf32, #tpu.memory_space<smem>>
    %36 = vector.broadcast %34 : f32 to vector<4x128xf32>
    %37 = arith.maximumf %36, %25 : vector<4x128xf32>
    %38 = vector.broadcast %35 : f32 to vector<4x128xf32>
    %39 = arith.minimumf %38, %37 : vector<4x128xf32>
    %c0_23 = arith.constant 0 : index
    %c0_24 = arith.constant 0 : index
    %40 = vector.load %arg10[%c0_23, %c0_24] : memref<16x128xf32, #tpu.memory_space<vmem>>, vector<4x128xf32>
    tpu.vector_store %arg10[%c0_23, %c0_24], %39 {strides = array<i32>} : memref<16x128xf32, #tpu.memory_space<vmem>>, vector<4x128xf32>,
    %c4 = arith.constant 4 : index
    %c0_25 = arith.constant 0 : index
    %41 = vector.load %arg10[%c4, %c0_25] : memref<16x128xf32, #tpu.memory_space<vmem>>, vector<4x128xf32>
    tpu.vector_store %arg10[%c4, %c0_25], %33 {strides = array<i32>} : memref<16x128xf32, #tpu.memory_space<vmem>>, vector<4x128xf32>,
    %c8 = arith.constant 8 : index
    %c0_26 = arith.constant 0 : index
    %42 = vector.load %arg10[%c8, %c0_26] : memref<16x128xf32, #tpu.memory_space<vmem>>, vector<4x128xf32>
    tpu.vector_store %arg10[%c8, %c0_26], %20 {strides = array<i32>} : memref<16x128xf32, #tpu.memory_space<vmem>>, vector<4x128xf32>,
    %c12 = arith.constant 12 : index
    %c0_27 = arith.constant 0 : index
    %43 = vector.load %arg10[%c12, %c0_27] : memref<16x128xf32, #tpu.memory_space<vmem>>, vector<4x128xf32>
    tpu.vector_store %arg10[%c12, %c0_27], %22 {strides = array<i32>} : memref<16x128xf32, #tpu.memory_space<vmem>>, vector<4x128xf32>,
    return
  }
  func.func @transform_0(%arg0: i32) -> i32 {
    %c0_i32 = arith.constant 0 : i32
    %c0_i32_0 = arith.constant 0 : i32
    return %c0_i32 : i32
  }
  func.func @transform_1(%arg0: i32) -> (i32, i32) {
    %c0_i32 = arith.constant 0 : i32
    %c0_i32_0 = arith.constant 0 : i32
    return %arg0, %c0_i32 : i32, i32
  }
  func.func @transform_2(%arg0: i32) -> (i32, i32) {
    %c0_i32 = arith.constant 0 : i32
    %c0_i32_0 = arith.constant 0 : i32
    return %c0_i32, %arg0 : i32, i32
  }
  func.func @transform_3(%arg0: i32) -> (i32, i32) {
    %c0_i32 = arith.constant 0 : i32
    %c0_i32_0 = arith.constant 0 : i32
    %c0_i32_1 = arith.constant 0 : i32
    return %c0_i32, %c0_i32_0 : i32, i32
  }
  func.func @transform_4(%arg0: i32) -> (i32, i32) {
    %c0_i32 = arith.constant 0 : i32
    %c0_i32_0 = arith.constant 0 : i32
    %c0_i32_1 = arith.constant 0 : i32
    return %c0_i32, %c0_i32_0 : i32, i32
  }
  func.func @transform_5(%arg0: i32) -> (i32, i32) {
    %c0_i32 = arith.constant 0 : i32
    %c0_i32_0 = arith.constant 0 : i32
    %c0_i32_1 = arith.constant 0 : i32
    return %c0_i32, %c0_i32_0 : i32, i32
  }
  func.func @transform_6(%arg0: i32) -> (i32, i32) {
    %c0_i32 = arith.constant 0 : i32
    %c0_i32_0 = arith.constant 0 : i32
    %c0_i32_1 = arith.constant 0 : i32
    return %c0_i32, %c0_i32_0 : i32, i32
  }
  func.func @transform_7(%arg0: i32) -> (i32, i32) {
    %c0_i32 = arith.constant 0 : i32
    %c0_i32_0 = arith.constant 0 : i32
    %c0_i32_1 = arith.constant 0 : i32
    return %c0_i32, %c0_i32_0 : i32, i32
  }
  func.func @transform_8(%arg0: i32) -> (i32, i32) {
    %c0_i32 = arith.constant 0 : i32
    %c0_i32_0 = arith.constant 0 : i32
    %c0_i32_1 = arith.constant 0 : i32
    return %c0_i32, %c0_i32_0 : i32, i32
  }
  func.func @transform_9(%arg0: i32) -> (i32, i32) {
    %c0_i32 = arith.constant 0 : i32
    %c0_i32_0 = arith.constant 0 : i32
    return %c0_i32, %arg0 : i32, i32
  }
}

</mosaic_0001>

<llo_original>
// kernel: nongraph_actor_forward.1
$region0: #{nongraph_actor_forward.1}
  #allocation0 [shape = 'u32[]', space=smem, size = 0x4, offset = 0x4, fixed_abs, tag = 'smem constant byte address 0x4 - core index']
  #allocation1 [shape = 'u32[72,128]{1,0:T(1,128)}', space=vmem, size = 0x9000, scoped, tag = 'internal scratch']
  %s0 = inlined_call_operand.vmem [shape: f32[2], index: 0, kind: input, shape index: {}]
  %s1 = inlined_call_operand.vmem [shape: f32[8,8], index: 1, kind: input, shape index: {}]
  %s2 = inlined_call_operand.vmem [shape: f32[4,8], index: 2, kind: input, shape index: {}]
  %s3 = inlined_call_operand.vmem [shape: f32[32,8], index: 3, kind: input, shape index: {}]
  %s4 = inlined_call_operand.vmem [shape: f32[32,1], index: 4, kind: input, shape index: {}]
  %s5 = inlined_call_operand.vmem [shape: f32[32,32], index: 5, kind: input, shape index: {}]
  %s6 = inlined_call_operand.vmem [shape: f32[32,1], index: 6, kind: input, shape index: {}]
  %s7 = inlined_call_operand.vmem [shape: f32[8,32], index: 7, kind: input, shape index: {}]
  %s8 = inlined_call_operand.vmem [shape: f32[8,1], index: 8, kind: input, shape index: {}]
  %s9 = inlined_call_operand.vmem [shape: f32[16,8], index: 9, kind: output, shape index: {}]
  %s10 = sld [smem:[#allocation0]]
  $region50: #{nongraph_actor_forward.1} parent=0
    _
  %s12 = ssub.s32 1, %s10
  %s13 = scalar_select 0, %s12, %s10
  $region1: #{nongraph_actor_forward.1} parent=0
    #allocation2 [shape = 'u8[512]{0}', space=smem, size = 0x200, scoped, tag = 'input window, operand 0, single buffered']
    #allocation3 [shape = 's32[1]{0}', space=sflag, size = 0x4, scoped, tag = 'scoped memory for nongraph_actor_forward.1']
    %14 = vsyncpa [#allocation3], 0
    // Predicated region
    $region2: #{nongraph_actor_forward.1} parent=1 // pred_check
      _
    $region3: #{nongraph_actor_forward.1} parent=1 // pred_check_branch
      %16 = sbr.rel (0) target = $region5
    $region4: #{nongraph_actor_forward.1} parent=1 // pred_region
      %18 = vsyncadd [#allocation3], 0
      %s20 = sshll.u32 %s0, 4
      %s21 = int_to_ptr.vmem [resolvable:$true] %s20
      %23 = dma.vmem_to_smem %s21, 16, [#allocation2], [#allocation3]
    $region5: #{nongraph_actor_forward.1} parent=1 // pred_fallthru
      _
    // Predicated region
    $region6: #{nongraph_actor_forward.1} parent=1 // pred_check
      _
    $region7: #{nongraph_actor_forward.1} parent=1 // pred_check_branch
      %25 = sbr.rel (0) target = $region9
    $region8: #{nongraph_actor_forward.1} parent=1 // pred_region
      _
    $region9: #{nongraph_actor_forward.1} parent=1 // pred_fallthru
      _
    // Predicated region
    $region10: #{nongraph_actor_forward.1} parent=1 // pred_check
      _
    $region11: #{nongraph_actor_forward.1} parent=1 // pred_check_branch
      %27 = sbr.rel (0) target = $region13
    $region12: #{nongraph_actor_forward.1} parent=1 // pred_region
      _
    $region13: #{nongraph_actor_forward.1} parent=1 // pred_fallthru
      _
    // Predicated region
    $region14: #{nongraph_actor_forward.1} parent=1 // pred_check
      _
    $region15: #{nongraph_actor_forward.1} parent=1 // pred_check_branch
      %29 = sbr.rel (0) target = $region17
    $region16: #{nongraph_actor_forward.1} parent=1 // pred_region
      _
    $region17: #{nongraph_actor_forward.1} parent=1 // pred_fallthru
      _
    // Predicated region
    $region18: #{nongraph_actor_forward.1} parent=1 // pred_check
      _
    $region19: #{nongraph_actor_forward.1} parent=1 // pred_check_branch
      %31 = sbr.rel (0) target = $region21
    $region20: #{nongraph_actor_forward.1} parent=1 // pred_region
      _
    $region21: #{nongraph_actor_forward.1} parent=1 // pred_fallthru
      _
    // Predicated region
    $region22: #{nongraph_actor_forward.1} parent=1 // pred_check
      _
    $region23: #{nongraph_actor_forward.1} parent=1 // pred_check_branch
      %33 = sbr.rel (0) target = $region25
    $region24: #{nongraph_actor_forward.1} parent=1 // pred_region
      _
    $region25: #{nongraph_actor_forward.1} parent=1 // pred_fallthru
      _
    // Predicated region
    $region26: #{nongraph_actor_forward.1} parent=1 // pred_check
      _
    $region27: #{nongraph_actor_forward.1} parent=1 // pred_check_branch
      %35 = sbr.rel (0) target = $region29
    $region28: #{nongraph_actor_forward.1} parent=1 // pred_region
      _
    $region29: #{nongraph_actor_forward.1} parent=1 // pred_fallthru
      _
    // Predicated region
    $region30: #{nongraph_actor_forward.1} parent=1 // pred_check
      _
    $region31: #{nongraph_actor_forward.1} parent=1 // pred_check_branch
      %37 = sbr.rel (0) target = $region33
    $region32: #{nongraph_actor_forward.1} parent=1 // pred_region
      _
    $region33: #{nongraph_actor_forward.1} parent=1 // pred_fallthru
      _
    // Predicated region
    $region34: #{nongraph_actor_forward.1} parent=1 // pred_check
      _
    $region35: #{nongraph_actor_forward.1} parent=1 // pred_check_branch
      %39 = sbr.rel (0) target = $region37
    $region36: #{nongraph_actor_forward.1} parent=1 // pred_region
      _
    $region37: #{nongraph_actor_forward.1} parent=1 // pred_fallthru
      _
    // Predicated region
    $region38: #{nongraph_actor_forward.1} parent=1 // pred_check
      _
    $region39: #{nongraph_actor_forward.1} parent=1 // pred_check_branch
      %41 = sbr.rel (0) target = $region41
    $region40: #{nongraph_actor_forward.1} parent=1 // pred_region
      %43 = dma.done [#allocation3], 16
    $region41: #{nongraph_actor_forward.1} parent=1 // pred_fallthru
      _
    %44 = sfence
    %v45 = vld [vmem:[%s3] sm:$0xff]
    %v46 = vld [vmem:[%s3 + $0x8] sm:$0xff]
    %v47 = vld [vmem:[%s3 + $0x10] sm:$0xff]
    %v48 = vld [vmem:[%s3 + $0x18] sm:$0xff]
    %v49 = vld [vmem:[%s1] sm:$0xff]
    %v50 = vld [vmem:[%s1 + $0x8] sm:$0xff]
    %v51 = vld [vmem:[%s1 + $0x10] sm:$0xff]
    %v52 = vld [vmem:[%s1 + $0x18] sm:$0xff]
    %v53 = vld [vmem:[%s1 + $0x20] sm:$0xff]
    %v54 = vld [vmem:[%s1 + $0x28] sm:$0xff]
    %v55 = vld [vmem:[%s1 + $0x30] sm:$0xff]
    %v56 = vld [vmem:[%s1 + $0x38] sm:$0xff]
    %v57 = vld [vmem:[%s1 + $0x40] sm:$0xff]
    %v58 = vld [vmem:[%s1 + $0x48] sm:$0xff]
    %v59 = vld [vmem:[%s1 + $0x50] sm:$0xff]
    %v60 = vld [vmem:[%s1 + $0x58] sm:$0xff]
    %v61 = vld [vmem:[%s1 + $0x60] sm:$0xff]
    %v62 = vld [vmem:[%s1 + $0x68] sm:$0xff]
    %v63 = vld [vmem:[%s1 + $0x70] sm:$0xff]
    %v64 = vld [vmem:[%s1 + $0x78] sm:$0xff]
    %v65 = vld [vmem:[%s4] sm:$0xff]
    %v66 = vld [vmem:[%s4 + $0x8] sm:$0xff]
    %v67 = vld [vmem:[%s4 + $0x10] sm:$0xff]
    %v68 = vld [vmem:[%s4 + $0x18] sm:$0xff]
    %70 = vset.pattern.permute.xlu0 0
    %71 = vperm.xlu0 %70, %v65
    %v72 = vpop.permute.xlu0 %71
    %75 = vset.pattern.permute.xlu0 0
    %76 = vperm.xlu0 %75, %v66
    %v77 = vpop.permute.xlu0 %76
    %80 = vset.pattern.permute.xlu0 0
    %81 = vperm.xlu0 %80, %v67
    %v82 = vpop.permute.xlu0 %81
    %85 = vset.pattern.permute.xlu0 0
    %86 = vperm.xlu0 %85, %v68
    %v87 = vpop.permute.xlu0 %86
    %vm89 = vcmask 64512
    %v91 = vsel %vm89, %v45, 0
    %v94 = vsel %vm89, %v46, 0
    %v97 = vsel %vm89, %v47, 0
    %v100 = vsel %vm89, %v48, 0
    %v103 = vsel %vm89, %v49, 0
    %v106 = vsel %vm89, %v50, 0
    %v109 = vsel %vm89, %v51, 0
    %v112 = vsel %vm89, %v52, 0
    %v115 = vsel %vm89, %v53, 0
    %v118 = vsel %vm89, %v54, 0
    %v121 = vsel %vm89, %v55, 0
    %v124 = vsel %vm89, %v56, 0
    %v127 = vsel %vm89, %v57, 0
    %v130 = vsel %vm89, %v58, 0
    %v133 = vsel %vm89, %v59, 0
    %v136 = vsel %vm89, %v60, 0
    %v139 = vsel %vm89, %v61, 0
    %v142 = vsel %vm89, %v62, 0
    %v145 = vsel %vm89, %v63, 0
    %v148 = vsel %vm89, %v64, 0
    %150 = vmatpush.xpose.msra.mxu0 %v148
    %151 = vmatpush.xpose.msra.mxu0 %v145
    %152 = vmatpush.xpose.msra.mxu0 %v142
    %153 = vmatpush.xpose.msra.mxu0 %v139
    %154 = vmatpush.xpose.msra.mxu0 %v136
    %155 = vmatpush.xpose.msra.mxu0 %v133
    %156 = vmatpush.xpose.msra.mxu0 %v130
    %157 = vmatpush.xpose.msra.mxu0 %v127
    %158 = vmatpush.xpose.msra.mxu0 %v124
    %159 = vmatpush.xpose.msra.mxu0 %v121
    %160 = vmatpush.xpose.msra.mxu0 %v118
    %161 = vmatpush.xpose.msra.mxu0 %v115
    %162 = vmatpush.xpose.msra.mxu0 %v112
    %163 = vmatpush.xpose.msra.mxu0 %v109
    %164 = vmatpush.xpose.msra.mxu0 %v106
    %165 = vmatpush.xpose.msra.mxu0 %v103
    %166 = vmatmul.f32.gmra.mxu0 %v91
    %v167 = vpop.f32.mrf.mxu0
    %v168 = vadd.f32 %v72, %v167
    %169 = vmatmul.f32.gmra.mxu0 %v94
    %v170 = vpop.f32.mrf.mxu0
    %v171 = vadd.f32 %v77, %v170
    %172 = vmatmul.f32.gmra.mxu0 %v97
    %v173 = vpop.f32.mrf.mxu0
    %v174 = vadd.f32 %v82, %v173
    %175 = vmatmul.f32.gmra.mxu0 %v100
    %v176 = vpop.f32.mrf.mxu0
    %v177 = vadd.f32 %v87, %v176
    %178 = vdwg.mxu0
    %v179 = vmax.f32 %v168, 0.0
    %v180 = vmax.f32 %v171, 0.0
    %v181 = vmax.f32 %v174, 0.0
    %v182 = vmax.f32 %v177, 0.0
    %v183 = vld [vmem:[%s5] sm:$0xff]
    %v184 = vld [vmem:[%s5 + $0x8] sm:$0xff]
    %v185 = vld [vmem:[%s5 + $0x10] sm:$0xff]
    %v186 = vld [vmem:[%s5 + $0x18] sm:$0xff]
    %v187 = vld [vmem:[%s6] sm:$0xff]
    %v188 = vld [vmem:[%s6 + $0x8] sm:$0xff]
    %v189 = vld [vmem:[%s6 + $0x10] sm:$0xff]
    %v190 = vld [vmem:[%s6 + $0x18] sm:$0xff]
    %192 = vset.pattern.permute.xlu0 0
    %193 = vperm.xlu0 %192, %v187
    %v194 = vpop.permute.xlu0 %193
    %197 = vset.pattern.permute.xlu0 0
    %198 = vperm.xlu0 %197, %v188
    %v199 = vpop.permute.xlu0 %198
    %202 = vset.pattern.permute.xlu0 0
    %203 = vperm.xlu0 %202, %v189
    %v204 = vpop.permute.xlu0 %203
    %207 = vset.pattern.permute.xlu0 0
    %208 = vperm.xlu0 %207, %v190
    %v209 = vpop.permute.xlu0 %208
    %vm211 = vcmask 261120
    %v213 = vsel %vm211, %v183, 0
    %v216 = vsel %vm211, %v184, 0
    %v219 = vsel %vm211, %v185, 0
    %v222 = vsel %vm211, %v186, 0
    %224 = vmatpush.msra.mxu0 0.0
    %225 = vmatpush.msra.mxu0 0.0
    %226 = vmatpush.msra.mxu0 0.0
    %227 = vmatpush.msra.mxu0 0.0
    %228 = vmatpush.msra.mxu0 0.0
    %229 = vmatpush.msra.mxu0 0.0
    %230 = vmatpush.msra.mxu0 0.0
    %231 = vmatpush.msra.mxu0 0.0
    %232 = vmatpush.msra.mxu0 0.0
    %233 = vmatpush.msra.mxu0 0.0
    %234 = vmatpush.msra.mxu0 0.0
    %235 = vmatpush.msra.mxu0 0.0
    %236 = vmatpush.msra.mxu0 %v182
    %237 = vmatpush.msra.mxu0 %v181
    %238 = vmatpush.msra.mxu0 %v180
    %239 = vmatpush.msra.mxu0 %v179
    %240 = vmatmul.f32.gmra.mxu0 %v213
    %v241 = vpop.f32.mrf.mxu0
    %v242 = vadd.f32 %v194, %v241
    %243 = vmatmul.f32.gmra.mxu0 %v216
    %v244 = vpop.f32.mrf.mxu0
    %v245 = vadd.f32 %v199, %v244
    %246 = vmatmul.f32.gmra.mxu0 %v219
    %v247 = vpop.f32.mrf.mxu0
    %v248 = vadd.f32 %v204, %v247
    %249 = vmatmul.f32.gmra.mxu0 %v222
    %v250 = vpop.f32.mrf.mxu0
    %v251 = vadd.f32 %v209, %v250
    %252 = vdwg.mxu0
    %v253 = vmax.f32 %v242, 0.0
    %v254 = vmax.f32 %v245, 0.0
    %v255 = vmax.f32 %v248, 0.0
    %v256 = vmax.f32 %v251, 0.0
    %v257 = vld [vmem:[%s7] sm:$0xff]
    %v258 = vld [vmem:[%s8] sm:$0xff]
    %260 = vset.pattern.permute.xlu0 0
    %261 = vperm.xlu0 %260, %v258
    %v262 = vpop.permute.xlu0 %261
    %v265 = vsel %vm211, %v257, 0
    %267 = vmatpush.msra.mxu0 0.0
    %268 = vmatpush.msra.mxu0 0.0
    %269 = vmatpush.msra.mxu0 0.0
    %270 = vmatpush.msra.mxu0 0.0
    %271 = vmatpush.msra.mxu0 0.0
    %272 = vmatpush.msra.mxu0 0.0
    %273 = vmatpush.msra.mxu0 0.0
    %274 = vmatpush.msra.mxu0 0.0
    %275 = vmatpush.msra.mxu0 0.0
    %276 = vmatpush.msra.mxu0 0.0
    %277 = vmatpush.msra.mxu0 0.0
    %278 = vmatpush.msra.mxu0 0.0
    %279 = vmatpush.msra.mxu0 %v256
    %280 = vmatpush.msra.mxu0 %v255
    %281 = vmatpush.msra.mxu0 %v254
    %282 = vmatpush.msra.mxu0 %v253
    %283 = vmatmul.f32.gmra.mxu0 %v265
    %v284 = vpop.f32.mrf.mxu0
    %v285 = vadd.f32 %v262, %v284
    %286 = vdwg.mxu0
    %v287 = vmul.f32 %v285, 1.442695
    %v288 = vpow.pop %v287
    %v289 = vld [vmem:[%s2] sm:$0xf]
    %v291 = vrot.slane %v289, 4
    %v293 = vmul.f32 %v288, %v291
    %v295 = vrot.slane %v293, 4
    %v297 = vadd.f32 %v285, %v295
    %v298 = vmul.f32 %v289, -0.5
    %v299 = vmul.f32 %v298, %v289
    %v301 = vrot.slane %v285, 4
    %v303 = vsub.f32 %v299, %v301
    %v304 = vsub.f32 %v303, 0.9189385
    %s305 = sld [smem:[#allocation2]]
    %s306 = sld [smem:[#allocation2 + $0x1]]
    %v307 = vstv %s305
    %v308 = vmax.f32 %v307, %v297
    %v309 = vstv %s306
    %v310 = vmin.f32 %v309, %v308
    %311 = vst [vmem:[%s9] sm:$0xf] %v310
    %312 = vst [vmem:[%s9 + $0x4] sm:$0xf] %v304
    %313 = vst [vmem:[%s9 + $0x8] sm:$0xf] %v285
    %314 = vst [vmem:[%s9 + $0x8] sm:$0xf0] %v288
    // Predicated region
    $region42: #{nongraph_actor_forward.1} parent=1 // pred_check
      _
    $region43: #{nongraph_actor_forward.1} parent=1 // pred_check_branch
      %316 = sbr.rel (0) target = $region45
    $region44: #{nongraph_actor_forward.1} parent=1 // pred_region
      _
    $region45: #{nongraph_actor_forward.1} parent=1 // pred_fallthru
      _
    // Predicated region
    $region46: #{nongraph_actor_forward.1} parent=1 // pred_check
      _
    $region47: #{nongraph_actor_forward.1} parent=1 // pred_check_branch
      %318 = sbr.rel (0) target = $region49
    $region48: #{nongraph_actor_forward.1} parent=1 // pred_region
      _
    $region49: #{nongraph_actor_forward.1} parent=1 // pred_fallthru
      _
    %319 = vsyncpa [#allocation3], 1

</llo_original>
